<compile_context>
chip_gen: v7x
topology: tpu7x:2x2x1
jax: 0.10.0
libtpu: 0.0.40
codegen_flags: <defaults>
</compile_context>

<pallas_src>
import math

import jax
import jax.numpy as jnp
from jax.experimental import pallas as pl
from jax.experimental.pallas import tpu as pltpu


# ----------------------------- kernels -------------------------------------

def _mul_kernel(h_ref, t_ref, o_ref):
    # Elementwise product of two equal-shaped blocks (any rank).
    o_ref[...] = h_ref[...] * t_ref[...]


def _split_mul_kernel(x_ref, o_ref):
    # x_ref: (tr, C) full-width rows; o_ref: (tr, C // 2).
    half = x_ref.shape[-1] // 2
    o_ref[...] = x_ref[:, :half] * x_ref[:, half:]


# ----------------------------- helpers --------------------------------------

def _sublane_multiple(dtype):
    # Native packed sublane tile: 8 rows f32, 16 bf16, 32 int8/fp8.
    itemsize = jnp.dtype(dtype).itemsize
    return max(8, 32 // max(1, itemsize))


def _round_down(v, m):
    return max(m, (v // m) * m)


def _compiler_params(n_axes, single_buffer_block_bytes):
    # Double-buffered footprint + headroom; floor above every default scoped
    # limit (v5e 16 MiB), ceiling below v7x's 64 MiB physical VMEM.
    want = 2 * single_buffer_block_bytes + (4 << 20)
    limit = int(min(max(want, 32 << 20), 56 << 20))
    return pltpu.CompilerParams(
        dimension_semantics=("parallel",) * n_axes,
        vmem_limit_bytes=limit,
    )


def _cost(out_elems, bytes_accessed):
    # One multiply per output element; advisory only (helps XLA schedule
    # producers/consumers around the custom call).
    return pl.CostEstimate(flops=out_elems, transcendentals=0,
                           bytes_accessed=bytes_accessed)


def lglu_ref(x, dim=-1):
    h, t = jnp.split(x, 2, axis=dim)
    return h * t


# ----------------------------- last-dim path --------------------------------

def _lglu_last_dim(x, half, sub, itemsize, budget):
    C = x.shape[-1]
    rows = math.prod(x.shape[:-1])
    x2d = x.reshape(rows, C)                      # metadata-only reshape
    out_shape2d = jax.ShapeDtypeStruct((rows, half), x.dtype)
    out_elems = rows * half
    bytes_accessed = rows * (C + half) * itemsize
    full_row_bytes = C * itemsize
    aligned = (half % 128 == 0)

    if aligned and sub * full_row_bytes > budget:
        # Very wide aligned rows: tile the lane axis too, using two lane-offset
        # views of the same array (keeps blocks small and output lane-dense).
        tr = rows if rows <= sub else sub
        half_budget = max(1, budget // 2)
        nl = half // 128
        max_d = max(1, half_budget // (tr * 128 * itemsize))
        d = 1
        for cand in range(min(nl, max_d), 0, -1):
            if nl % cand == 0:
                d = cand
                break
        tl = 128 * d
        off = half // tl
        grid = (pl.cdiv(rows, tr), half // tl)
        block_bytes = 3 * tr * tl * itemsize
        out2d = pl.pallas_call(
            _mul_kernel,
            out_shape=out_shape2d,
            grid=grid,
            in_specs=[
                pl.BlockSpec((tr, tl), lambda i, j: (i, j)),
                pl.BlockSpec((tr, tl), lambda i, j: (i, j + off)),
            ],
            out_specs=pl.BlockSpec((tr, tl), lambda i, j: (i, j)),
            compiler_params=_compiler_params(2, block_bytes),
            cost_estimate=_cost(out_elems, bytes_accessed),
        )(x2d, x2d)
    else:
        if (not aligned) and sub * full_row_bytes > 2 * budget:
            # Pathologically wide, unaligned rows would blow VMEM; XLA handles it.
            return lglu_ref(x, -1)
        # Row-tiled full-width blocks: ONE input DMA per step, split in-kernel
        # (the split offset is 128-aligned whenever half % 128 == 0).
        tr = max(1, budget // full_row_bytes)
        if tr >= rows:
            tr = rows
            if rows >= 2 * sub:
                # Keep >= 2 grid steps so both v7x TensorCores get work.
                tr = _round_down((rows + 1) // 2, sub)
        else:
            tr = _round_down(tr, sub)
        grid = (pl.cdiv(rows, tr),)
        block_bytes = tr * (C + half) * itemsize
        out2d = pl.pallas_call(
            _split_mul_kernel,
            out_shape=out_shape2d,
            grid=grid,
            in_specs=[pl.BlockSpec((tr, C), lambda i: (i, 0))],
            out_specs=pl.BlockSpec((tr, half), lambda i: (i, 0)),
            compiler_params=_compiler_params(1, block_bytes),
            cost_estimate=_cost(out_elems, bytes_accessed),
        )(x2d)

    return out2d.reshape(x.shape[:-1] + (half,))


# ----------------------------- mid-dim path ---------------------------------

def _lglu_mid_dim(x, dim, half, sub, itemsize, budget):
    # Split along a non-last dim WITHOUT transposing: reshape (metadata-only)
    # to (P, Dk, Q, L) and use two BlockSpecs offset by one half-block along Dk.
    shape = x.shape
    ndim = x.ndim
    P = math.prod(shape[:dim])
    Dk = shape[dim]
    Q = math.prod(shape[dim + 1:ndim - 1])
    L = shape[-1]
    Hk = half
    x4 = x.reshape(P, Dk, Q, L)

    per_half_budget = max(1, budget // 2)
    max_elems = per_half_budget // max(1, Hk * itemsize)   # max tq*tl per block

    if max_elems < min(Q, sub) * min(L, 128):
        # Half-block along the split axis too large for VMEM even at the
        # smallest legal (sublane, lane) tile; rare — let XLA handle it.
        # TODO(synk): also tile the split axis itself for these shapes.
        return lglu_ref(x, dim)

    m = min(Q, sub)
    tl_cap = max_elems // m
    tl = L if tl_cap >= L else _round_down(tl_cap, 128)
    tq_cap = max_elems // tl
    tq = Q if tq_cap >= Q else _round_down(tq_cap, sub)

    # Guarantee >= 2 grid steps when possible (v7x megacore).
    def _steps(n, t):
        return (n + t - 1) // t
    if P * _steps(Q, tq) * _steps(L, tl) < 2:
        if Q >= 2 * sub:
            tq = _round_down((Q + 1) // 2, sub)
        elif L >= 2 * 128:
            tl = _round_down((L + 1) // 2, 128)

    grid = (P, _steps(Q, tq), _steps(L, tl))
    block = (1, Hk, tq, tl)
    block_bytes = 3 * Hk * tq * tl * itemsize
    out_elems = P * Hk * Q * L
    bytes_accessed = (P * Dk * Q * L + out_elems) * itemsize

    out4 = pl.pallas_call(
        _mul_kernel,
        out_shape=jax.ShapeDtypeStruct((P, Hk, Q, L), x.dtype),
        grid=grid,
        in_specs=[
            pl.BlockSpec(block, lambda p, q, l: (p, 0, q, l)),   # first half
            pl.BlockSpec(block, lambda p, q, l: (p, 1, q, l)),   # second half
        ],
        out_specs=pl.BlockSpec(block, lambda p, q, l: (p, 0, q, l)),
        compiler_params=_compiler_params(3, block_bytes),
        cost_estimate=_cost(out_elems, bytes_accessed),
    )(x4, x4)

    return out4.reshape(shape[:dim] + (Hk,) + shape[dim + 1:])


# ----------------------------- public wrapper -------------------------------

def lglu_pallas(x, dim=-1, *, target_input_block_bytes=8 << 20,
                min_pallas_bytes=1 << 20, force_pallas=False):
    """LGLU: split `dim` in half, return elementwise product of the halves."""
    ndim = x.ndim
    dim = dim % ndim
    C = x.shape[dim]
    if C % 2 != 0:
        raise ValueError(f"LGLU split dim must be even, got {C}")
    half = C // 2

    itemsize = jnp.dtype(x.dtype).itemsize
    total_bytes = x.size * itemsize
    sub = _sublane_multiple(x.dtype)

    # Tiny inputs: per-step overhead + masked partial stores make the kernel
    # slower than a fused XLA elementwise multiply — route them away.
    if not force_pallas and total_bytes < min_pallas_bytes:
        return lglu_ref(x, dim)

    if dim == ndim - 1:
        return _lglu_last_dim(x, half, sub, itemsize, target_input_block_bytes)
    return _lglu_mid_dim(x, dim, half, sub, itemsize, target_input_block_bytes)


# ----------------------------- tests -----------------------------------------

if __name__ == "__main__":
    key = jax.random.PRNGKey(0)
    k1, k2, k3 = jax.random.split(key, 3)

    # 1) Aligned last-dim path (half % 128 == 0): one DMA/step, in-kernel split.
    x1 = jax.random.normal(k1, (2, 8, 256), dtype=jnp.float32)
    y1 = jax.block_until_ready(lglu_pallas(x1, force_pallas=True))
    assert y1.shape == (2, 8, 128) and y1.dtype == x1.dtype
    assert bool(jnp.allclose(y1, lglu_ref(x1), atol=1e-6, rtol=1e-6)), \
        "aligned last-dim path mismatch"

    # 2) Unaligned last-dim path (half = 16): full-row block, split in kernel.
    x2 = jax.random.normal(k2, (2, 4, 16, 32), dtype=jnp.float32)
    y2 = jax.block_until_ready(lglu_pallas(x2, force_pallas=True))
    assert y2.shape == (2, 4, 16, 16) and y2.dtype == x2.dtype
    assert bool(jnp.allclose(y2, lglu_ref(x2), atol=1e-6, rtol=1e-6)), \
        "unaligned last-dim path mismatch"

    # 3) Split along a non-last dim (PyTorch GLU dim=1 / NCHW): no transposes,
    #    two block views offset along the channel axis.
    x3 = jax.random.normal(k3, (2, 6, 16, 256), dtype=jnp.float32)
    y3 = jax.block_until_ready(lglu_pallas(x3, dim=1, force_pallas=True))
    assert y3.shape == (2, 3, 16, 256) and y3.dtype == x3.dtype
    assert bool(jnp.allclose(y3, lglu_ref(x3, dim=1), atol=1e-6, rtol=1e-6)), \
        "mid-dim path mismatch"

    # 4) Default routing (tiny input -> fused XLA path) stays identical.
    y2_default = jax.block_until_ready(lglu_pallas(x2))
    assert bool(jnp.allclose(y2_default, y2, atol=1e-6, rtol=1e-6))

    print("KERNEL_OK")
</pallas_src>

<mosaic_0001>
module attributes {stable_mosaic.version = 11 : i64} {
  func.func @_split_mul_kernel(%arg0: i32, %arg1: memref<8x256xf32, #tpu.memory_space<vmem>>, %arg2: memref<8x128xf32, #tpu.memory_space<vmem>>) attributes {dimension_semantics = [#tpu.dimension_semantics<parallel>], iteration_bounds = array<i64: 2>, scalar_prefetch = 0 : i64, scratch_operands = 0 : i64, tpu.core_type = #tpu.core_type<tc>, window_params = [{transform_indices = @transform_0, window_bounds = array<i64: 8, 256>}, {transform_indices = @transform_1, window_bounds = array<i64: 8, 128>}]} {
    %c0 = arith.constant 0 : index
    %c0_0 = arith.constant 0 : index
    %0 = vector.load %arg1[%c0, %c0_0] : memref<8x256xf32, #tpu.memory_space<vmem>>, vector<8x128xf32>
    %c0_1 = arith.constant 0 : index
    %c128 = arith.constant 128 : index
    %1 = vector.load %arg1[%c0_1, %c128] : memref<8x256xf32, #tpu.memory_space<vmem>>, vector<8x128xf32>
    %2 = arith.mulf %0, %1 : vector<8x128xf32>
    %c0_2 = arith.constant 0 : index
    %c0_3 = arith.constant 0 : index
    %3 = vector.load %arg2[%c0_2, %c0_3] : memref<8x128xf32, #tpu.memory_space<vmem>>, vector<8x128xf32>
    tpu.vector_store %arg2[%c0_2, %c0_3], %2 {strides = array<i32>} : memref<8x128xf32, #tpu.memory_space<vmem>>, vector<8x128xf32>,
    return
  }
  func.func @transform_0(%arg0: i32) -> (i32, i32) {
    %c0_i32 = arith.constant 0 : i32
    %c0_i32_0 = arith.constant 0 : i32
    return %arg0, %c0_i32 : i32, i32
  }
  func.func @transform_1(%arg0: i32) -> (i32, i32) {
    %c0_i32 = arith.constant 0 : i32
    %c0_i32_0 = arith.constant 0 : i32
    return %arg0, %c0_i32 : i32, i32
  }
}

</mosaic_0001>

<llo_original>
// kernel: tpu_custom_call.1
$region0: #{tpu_custom_call.1}
  #allocation0 [shape = 'u32[]', space=smem, size = 0x4, offset = 0x4, fixed_abs, tag = 'smem constant byte address 0x4 - core index']
  #allocation1 [shape = 'u32[144,128]{1,0:T(1,128)}', space=vmem, size = 0x12000, scoped, tag = 'internal scratch']
  %s0 = inlined_call_operand.hbm [shape: f32[16,256], index: 0, kind: input, shape index: {}]
  %s1 = inlined_call_operand.hbm [shape: f32[16,128], index: 1, kind: output, shape index: {}]
  %s2 = sld [smem:[#allocation0]]
  $region41: #{tpu_custom_call.1} parent=0
    _
  %s4 = ssub.s32 1, %s2
  %s5 = scalar_select 0, %s4, %s2
  $region1: #{tpu_custom_call.1} parent=0
    #allocation2 [shape = 'u8[16384]{0}', space=vmem, size = 0x4000, scoped, tag = 'input window, operand 0']
    #allocation3 [shape = 's32[2]{0}', space=sflag, size = 0x8, scoped, tag = 'scoped memory for tpu_custom_call.1']
    #allocation4 [shape = 's32[2]{0}', space=sflag, size = 0x8, scoped, tag = 'scoped memory for tpu_custom_call.1']
    #allocation5 [shape = 'u8[8192]{0}', space=vmem, size = 0x2000, scoped, tag = 'output window, operand 0']
    %6 = vsyncpa [#allocation3], 0
    %s7 = scalar_lea.sflag [#allocation3], 1
    %8 = vsyncpa %s7, 0
    %9 = vsyncpa [#allocation4], 0
    %s10 = scalar_lea.sflag [#allocation4], 1
    %11 = vsyncpa %s10, 0
    loop: start=0, step=1, limit=4
    $region2: #{tpu_custom_call.1} parent=1 // loop_pre_header
      _
    $region3: #{tpu_custom_call.1} parent=1 // loop_header
      %s13 = sphi 0, %s17
      %p14 = scmp.ge.s32.totalorder %s13, 4
      %s23 = sphi 0, %s25
      %s26 = sphi 0, %s23
      %s27 = sphi 0, %s26
      %s43 = sphi 0, %s27
      %s49 = sphi 0, %s51
      %s52 = sphi 0, %s49
      %s53 = sphi 0, %s52
      %s69 = sphi 0, %s53
    $region4: #{tpu_custom_call.1} parent=1 // loop_header_branch
      %16 = sbr.rel (%p14) target = $region8
    $region5: #{tpu_custom_call.1} parent=1 // loop_body
      %s18 = ssub.s32 %s13, 1
      %s19 = ssub.s32 %s13, 2
      %s20 = sadd.s32 %s13, 1
      %s21 = ssub.s32 %s13, %s20
      %p22 = scmp.eq.s32.totalorder %s21, 0
      %s24 = sadd.s32 %s23, 1
      %s25 = scalar_select %p22, %s23, %s24
      %p28 = pneg %p22
      %p29 = scmp.eq.s32.totalorder %s13, 1
      %p30 = por %p28, %p29
      %p31 = scmp.ne.s32.totalorder %s23, %s26
      %p32 = scmp.eq.s32.totalorder %s13, 0
      %p33 = por %p31, %p32
      %p34 = scmp.ne.s32.totalorder %s23, %s26
      %p35 = scmp.eq.s32.totalorder %s18, 1
      %p36 = por %p34, %p35
      %p37 = scmp.ne.s32.totalorder %s26, %s27
      %p38 = scmp.eq.s32.totalorder %s18, 0
      %p39 = por %p37, %p38
      %p40 = scmp.ne.s32.totalorder %s26, %s27
      %p41 = scmp.eq.s32.totalorder %s19, 1
      %p42 = por %p40, %p41
      %p44 = scmp.ne.s32.totalorder %s27, %s43
      %p45 = scmp.eq.s32.totalorder %s19, 0
      %p46 = por %p44, %p45
      %s47 = ssub.s32 %s13, %s20
      %p48 = scmp.eq.s32.totalorder %s47, 0
      %s50 = sadd.s32 %s49, 1
      %s51 = scalar_select %p48, %s49, %s50
      %p54 = pneg %p48
      %p55 = scmp.eq.s32.totalorder %s13, 1
      %p56 = por %p54, %p55
      %p57 = scmp.ne.s32.totalorder %s49, %s52
      %p58 = scmp.eq.s32.totalorder %s13, 0
      %p59 = por %p57, %p58
      %p60 = scmp.ne.s32.totalorder %s49, %s52
      %p61 = scmp.eq.s32.totalorder %s18, 1
      %p62 = por %p60, %p61
      %p63 = scmp.ne.s32.totalorder %s52, %s53
      %p64 = scmp.eq.s32.totalorder %s18, 0
      %p65 = por %p63, %p64
      %p66 = scmp.ne.s32.totalorder %s52, %s53
      %p67 = scmp.eq.s32.totalorder %s19, 1
      %p68 = por %p66, %p67
      %p70 = scmp.ne.s32.totalorder %s53, %s69
      %p71 = scmp.eq.s32.totalorder %s19, 0
      %p72 = por %p70, %p71
      %p73 = scmp.le.s32.totalorder 1, %s13
      %p74 = scmp.lt.s32.totalorder %s13, 3
      %p75 = pnand %p73, %p74
      %p76 = pneg %p75
      // Predicated region
      $region9: #{tpu_custom_call.1} parent=5 // pred_check
        _
      $region10: #{tpu_custom_call.1} parent=5 // pred_check_branch
        %78 = sbr.rel (%p75) target = $region12
      $region11: #{tpu_custom_call.1} parent=5 // pred_region
        %s79 = ssub.s32 %s13, 1
      $region12: #{tpu_custom_call.1} parent=5 // pred_fallthru
        _
      %p80 = scmp.lt.s32.totalorder %s13, 2
      // Predicated region
      $region13: #{tpu_custom_call.1} parent=5 // pred_check
        %p81 = pneg %p80
      $region14: #{tpu_custom_call.1} parent=5 // pred_check_branch
        %83 = sbr.rel (%p81) target = $region16
      $region15: #{tpu_custom_call.1} parent=5 // pred_region
        // Predicated region
        $region17: #{tpu_custom_call.1} parent=15 // pred_check
          %p84 = pneg %p33
        $region18: #{tpu_custom_call.1} parent=15 // pred_check_branch
          %86 = sbr.rel (%p84) target = $region20
        $region19: #{tpu_custom_call.1} parent=15 // pred_region
          %s87 = sand.u32 %s23, 1
          %s88 = scalar_lea.sflag [#allocation3], %s87
          %s89 = sand.u32 %s23, 1
          %s90 = smul.addr %s89, 16
          %s91 = scalar_lea.vmem [#allocation2], %s90
          %s93 = ssub.s32 256, 256
          %94 = vsyncadd %s88, %s93
          %s95 = smul.addr %s13, 2
          %s96 = smul.addr %s95, 128
          %s97 = scalar_lea.hbm %s0, %s96
          %s99 = sshll.u32 %s91, 4
          %s100 = int_to_ptr.vmem [resolvable:$true] %s99
          %102 = dma.hbm_to_vmem [thread:$0]  %s97, 256, %s100, %s88
        $region20: #{tpu_custom_call.1} parent=15 // pred_fallthru
          _
      $region16: #{tpu_custom_call.1} parent=5 // pred_fallthru
        _
      %p103 = scmp.le.s32.totalorder 1, %s13
      %p104 = scmp.lt.s32.totalorder %s13, 3
      %p105 = pnand %p103, %p104
      %p106 = pneg %p105
      // Predicated region
      $region21: #{tpu_custom_call.1} parent=5 // pred_check
        _
      $region22: #{tpu_custom_call.1} parent=5 // pred_check_branch
        %108 = sbr.rel (%p105) target = $region24
      $region23: #{tpu_custom_call.1} parent=5 // pred_region
        %s109 = ssub.s32 %s13, 1
        %s110 = sand.u32 %s26, 1
        %s111 = scalar_lea.sflag [#allocation3], %s110
        %s112 = sand.u32 %s26, 1
        %s113 = smul.addr %s112, 16
        %s114 = scalar_lea.vmem [#allocation2], %s113
        // Predicated region
        $region25: #{tpu_custom_call.1} parent=23 // pred_check
          %p115 = pneg %p39
        $region26: #{tpu_custom_call.1} parent=23 // pred_check_branch
          %117 = sbr.rel (%p115) target = $region28
        $region27: #{tpu_custom_call.1} parent=23 // pred_region
          %118 = dma.done %s111, 256
        $region28: #{tpu_custom_call.1} parent=23 // pred_fallthru
          _
        %s119 = sand.u32 %s26, 1
        %s120 = scalar_lea.sflag [#allocation3], %s119
        %s121 = sand.u32 %s26, 1
        %s122 = smul.addr %s121, 16
        %s123 = scalar_lea.vmem [#allocation2], %s122
        %p124 = pneg %p39
        %p125 = pneg %p36
        %p126 = pneg %p65
        %p127 = pneg %p62
        %s128 = sand.u32 %s52, 1
        %s129 = scalar_lea.sflag [#allocation4], %s128
        %s130 = sand.u32 %s52, 1
        %s131 = smul.addr %s130, 8
        %s132 = scalar_lea.vmem [#allocation5], %s131
        %v133 = vld [vmem:[%s114] sm:$0xff]
        %v134 = vld [vmem:[%s114 + $0x8] sm:$0xff]
        %v135 = vmul.f32 %v133, %v134
        %136 = vst [vmem:[%s132] sm:$0xff] %v135
        %s137 = sand.u32 %s52, 1
        %s138 = scalar_lea.sflag [#allocation4], %s137
        %s139 = sand.u32 %s52, 1
        %s140 = smul.addr %s139, 8
        %s141 = scalar_lea.vmem [#allocation5], %s140
        // Predicated region
        $region29: #{tpu_custom_call.1} parent=23 // pred_check
          %p142 = pneg %p62
        $region30: #{tpu_custom_call.1} parent=23 // pred_check_branch
          %144 = sbr.rel (%p142) target = $region32
        $region31: #{tpu_custom_call.1} parent=23 // pred_region
          %s146 = ssub.s32 128, 128
          %147 = vsyncadd %s138, %s146
          %s148 = smul.addr %s18, 128
          %s149 = scalar_lea.hbm %s1, %s148
          %s151 = sshll.u32 %s141, 4
          %s152 = int_to_ptr.vmem [resolvable:$true] %s151
          %154 = dma.vmem_to_hbm [thread:$0]  %s152, 128, %s149, %s138
        $region32: #{tpu_custom_call.1} parent=23 // pred_fallthru
          _
      $region24: #{tpu_custom_call.1} parent=5 // pred_fallthru
        _
      %p155 = scmp.le.s32.totalorder 2, %s13
      // Predicated region
      $region33: #{tpu_custom_call.1} parent=5 // pred_check
        %p156 = pneg %p155
      $region34: #{tpu_custom_call.1} parent=5 // pred_check_branch
        %158 = sbr.rel (%p156) target = $region36
      $region35: #{tpu_custom_call.1} parent=5 // pred_region
        %s159 = ssub.s32 %s13, 2
        // Predicated region
        $region37: #{tpu_custom_call.1} parent=35 // pred_check
          %p160 = pneg %p68
        $region38: #{tpu_custom_call.1} parent=35 // pred_check_branch
          %162 = sbr.rel (%p160) target = $region40
        $region39: #{tpu_custom_call.1} parent=35 // pred_region
          %s163 = sand.u32 %s53, 1
          %s164 = scalar_lea.sflag [#allocation4], %s163
          %s165 = sand.u32 %s53, 1
          %s166 = smul.addr %s165, 8
          %s167 = scalar_lea.vmem [#allocation5], %s166
          %168 = dma.done %s164, 128
        $region40: #{tpu_custom_call.1} parent=35 // pred_fallthru
          _
      $region36: #{tpu_custom_call.1} parent=5 // pred_fallthru
        _
    $region6: #{tpu_custom_call.1} parent=1 // loop_footer
      %s17 = sadd.s32 1, %s13
    $region7: #{tpu_custom_call.1} parent=1 // loop_footer_branch
      %12 = sbr.rel target = $region3
    $region8: #{tpu_custom_call.1} parent=1 // loop_exit
      _
    %169 = vsyncpa [#allocation3], 1
    %s170 = scalar_lea.sflag [#allocation3], 1
    %171 = vsyncpa %s170, 1
    %172 = vsyncpa [#allocation4], 1
    %s173 = scalar_lea.sflag [#allocation4], 1
    %174 = vsyncpa %s173, 1

</llo_original>
